<compile_context>
chip_gen: v7x
topology: tpu7x:2x2x1
jax: 0.10.0
libtpu: 0.0.40
codegen_flags: <defaults>
</compile_context>

<pallas_src>
import functools

import jax
import jax.numpy as jnp
from jax.experimental import pallas as pl
from jax.experimental.pallas import tpu as pltpu

LANE = 128


def _round_up(x, m):
    return (x + m - 1) // m * m


# ---------------------------------------------------------------------------
# Phase 1: conv as an MXU matmul + per-tile partial BN statistics.
# ---------------------------------------------------------------------------
def conv_stats_kernel(patches_ref, w_ref, conv_ref, stats_ref):
    # (TM, Kp) bf16 @ (Kp, Cp) bf16 -> f32 accumulation on the MXU.
    acc = jnp.dot(patches_ref[...], w_ref[...],
                  preferred_element_type=jnp.float32)
    conv_ref[...] = acc
    # Partial sums for training-mode BatchNorm.  Zero-padded rows/channels
    # produce exactly 0 and therefore contribute nothing to the sums.
    s = jnp.sum(acc, axis=0, keepdims=True)          # (1, Cp)
    ss = jnp.sum(acc * acc, axis=0, keepdims=True)   # (1, Cp)
    pad = jnp.zeros((6, acc.shape[1]), jnp.float32)  # pad to 8 sublanes
    stats_ref[...] = jnp.concatenate([s, ss, pad], axis=0)


# ---------------------------------------------------------------------------
# Phase 2: fused BatchNorm (precomputed scale/shift) + ReLU + Dropout.
# ---------------------------------------------------------------------------
def bn_relu_dropout_kernel(*refs, inv_keep, threshold, use_dropout):
    if use_dropout:
        conv_ref, scale_ref, shift_ref, bits_ref, out_ref = refs
    else:
        conv_ref, scale_ref, shift_ref, out_ref = refs
    y = conv_ref[...] * scale_ref[...] + shift_ref[...]
    y = jnp.maximum(y, 0.0)
    if use_dropout:
        # Integer compare on raw random bits: P(keep) = 1 - dropout_p.
        keep = bits_ref[...] >= jnp.uint32(threshold)
        y = jnp.where(keep, y * inv_keep, 0.0)
    out_ref[...] = y.astype(out_ref.dtype)


# ---------------------------------------------------------------------------
# Wrapper
# ---------------------------------------------------------------------------
def conv_block_forward(x_nchw, conv_w, conv_b, bn_gamma, bn_beta, *,
                       stride=1, padding=1, dropout_p=0.2, eps=1e-5,
                       training=True, dropout_seed=0, tile_m=512):
    assert stride == 1, "ConvBlock default stride=1 is implemented"
    N, Cin, H, W = x_nchw.shape
    Cout, Cin2, KH, KW = conv_w.shape
    assert Cin == Cin2

    # ---- glue: NCHW -> NHWC, spatial pad, im2col (tap order dy, dx, cin) ----
    x = jnp.transpose(x_nchw, (0, 2, 3, 1))
    xp = jnp.pad(x, ((0, 0), (padding, padding), (padding, padding), (0, 0)))
    Ho = H + 2 * padding - KH + 1
    Wo = W + 2 * padding - KW + 1
    cols = [xp[:, dy:dy + Ho, dx:dx + Wo, :]
            for dy in range(KH) for dx in range(KW)]
    patches = jnp.concatenate(cols, axis=-1).reshape(N * Ho * Wo, KH * KW * Cin)
    patches = patches.astype(jnp.bfloat16)           # bf16 feed to the MXU

    # (Cout, Cin, KH, KW) -> (KH*KW*Cin, Cout) matching (dy, dx, cin) order.
    w_mat = jnp.transpose(conv_w, (2, 3, 1, 0)).reshape(KH * KW * Cin, Cout)
    w_mat = w_mat.astype(jnp.bfloat16)

    M, K = patches.shape
    # Lane-dense padding: Cout/K -> multiples of 128; M -> multiple of TM.
    Cp = _round_up(Cout, LANE)
    Kp = _round_up(K, LANE)
    TM = _round_up(min(tile_m, _round_up(M, 8)), 8)
    Mp = _round_up(M, TM)
    n_tiles = Mp // TM

    patches_p = jnp.zeros((Mp, Kp), jnp.bfloat16).at[:M, :K].set(patches)
    w_p = jnp.zeros((Kp, Cp), jnp.bfloat16).at[:K, :Cout].set(w_mat)
    gamma_p = jnp.zeros((Cp,), jnp.float32).at[:Cout].set(
        bn_gamma.astype(jnp.float32))
    beta_p = jnp.zeros((Cp,), jnp.float32).at[:Cout].set(
        bn_beta.astype(jnp.float32))
    # Conv bias dropped on purpose: cancelled by training-mode BN mean
    # subtraction, so the block output is mathematically unchanged.
    del conv_b

    cparams = pltpu.CompilerParams(
        dimension_semantics=("parallel",),
        vmem_limit_bytes=32 * 1024 * 1024,
    )

    # ---- phase 1: conv + per-tile partial stats ----
    conv_out, stats = pl.pallas_call(
        conv_stats_kernel,
        grid=(n_tiles,),
        in_specs=[
            pl.BlockSpec((TM, Kp), lambda i: (i, 0)),   # patches tile
            pl.BlockSpec((Kp, Cp), lambda i: (0, 0)),   # weights (resident)
        ],
        out_specs=[
            pl.BlockSpec((TM, Cp), lambda i: (i, 0)),   # conv output tile
            pl.BlockSpec((8, Cp), lambda i: (i, 0)),    # per-tile stats
        ],
        out_shape=[
            jax.ShapeDtypeStruct((Mp, Cp), jnp.float32),
            jax.ShapeDtypeStruct((8 * n_tiles, Cp), jnp.float32),
        ],
        compiler_params=cparams,
    )(patches_p, w_p)

    # ---- tiny O(Cout) finalize of global batch statistics (glue) ----
    st = stats.reshape(n_tiles, 8, Cp)
    sum_x = jnp.sum(st[:, 0, :], axis=0)
    sum_xx = jnp.sum(st[:, 1, :], axis=0)
    m_real = jnp.float32(M)
    mean = sum_x / m_real
    var = jnp.maximum(sum_xx / m_real - mean * mean, 0.0)   # biased variance
    inv_std = jax.lax.rsqrt(var + jnp.float32(eps))
    scale = (gamma_p * inv_std).reshape(1, Cp)
    shift = (beta_p - mean * gamma_p * inv_std).reshape(1, Cp)

    # ---- phase 2: normalize + ReLU + dropout ----
    use_dropout = bool(training) and dropout_p > 0.0
    if use_dropout:
        bits = jax.random.bits(jax.random.PRNGKey(dropout_seed), (Mp, Cp),
                               dtype=jnp.uint32)
        threshold = min(int(dropout_p * (1 << 32)), (1 << 32) - 1)
        inv_keep = 1.0 / (1.0 - dropout_p)
        extra_inputs = (bits,)
        extra_specs = [pl.BlockSpec((TM, Cp), lambda i: (i, 0))]
    else:
        threshold, inv_keep = 0, 1.0
        extra_inputs = ()
        extra_specs = []

    kernel2 = functools.partial(bn_relu_dropout_kernel, inv_keep=inv_keep,
                                threshold=threshold, use_dropout=use_dropout)

    out = pl.pallas_call(
        kernel2,
        grid=(n_tiles,),
        in_specs=[
            pl.BlockSpec((TM, Cp), lambda i: (i, 0)),   # conv tile
            pl.BlockSpec((1, Cp), lambda i: (0, 0)),    # BN scale
            pl.BlockSpec((1, Cp), lambda i: (0, 0)),    # BN shift
            *extra_specs,                               # dropout bits
        ],
        out_specs=pl.BlockSpec((TM, Cp), lambda i: (i, 0)),
        out_shape=jax.ShapeDtypeStruct((Mp, Cp), jnp.float32),
        compiler_params=cparams,
    )(conv_out, scale, shift, *extra_inputs)

    out = out[:M, :Cout].reshape(N, Ho, Wo, Cout)
    return jnp.transpose(out, (0, 3, 1, 2))


# ---------------------------------------------------------------------------
# Pure-JAX reference (conv + training-mode BN + ReLU, no dropout) for a
# sanity check of the fused path.
# ---------------------------------------------------------------------------
def _reference_no_dropout(x, w, b, gamma, beta, eps=1e-5):
    y = jax.lax.conv_general_dilated(
        x, w, window_strides=(1, 1), padding=((1, 1), (1, 1)),
        dimension_numbers=("NCHW", "OIHW", "NCHW"))
    y = y + b.reshape(1, -1, 1, 1)
    mean = jnp.mean(y, axis=(0, 2, 3), keepdims=True)
    var = jnp.mean((y - mean) ** 2, axis=(0, 2, 3), keepdims=True)
    y = ((y - mean) * jax.lax.rsqrt(var + eps) * gamma.reshape(1, -1, 1, 1)
         + beta.reshape(1, -1, 1, 1))
    return jnp.maximum(y, 0.0)


if __name__ == "__main__":
    # Small shapes consistent with the module: batch=2, in_channels=4,
    # out_channels=8, spatial=16.
    N, CIN, COUT, H, W = 2, 4, 8, 16, 16

    key = jax.random.PRNGKey(0)
    kx, kw, kb = jax.random.split(key, 3)

    x = jax.random.normal(kx, (N, CIN, H, W), dtype=jnp.float32)
    conv_w = 0.1 * jax.random.normal(kw, (COUT, CIN, 3, 3), dtype=jnp.float32)
    conv_b = 0.1 * jax.random.normal(kb, (COUT,), dtype=jnp.float32)
    bn_gamma = jnp.ones((COUT,), dtype=jnp.float32)
    bn_beta = jnp.zeros((COUT,), dtype=jnp.float32)

    # Training forward (with dropout).
    y = conv_block_forward(x, conv_w, conv_b, bn_gamma, bn_beta,
                           dropout_p=0.2, training=True, dropout_seed=1234)
    y = jax.block_until_ready(y)
    assert y.shape == (N, COUT, H, W), y.shape
    assert bool(jnp.all(jnp.isfinite(y)))

    # Correctness cross-check with dropout disabled (bf16 matmul tolerance).
    y_nd = conv_block_forward(x, conv_w, conv_b, bn_gamma, bn_beta,
                              dropout_p=0.2, training=False)
    y_nd = jax.block_until_ready(y_nd)
    ref = _reference_no_dropout(x, conv_w, conv_b, bn_gamma, bn_beta)
    max_err = float(jnp.max(jnp.abs(y_nd - ref)))
    assert max_err < 0.1, f"max abs err vs reference: {max_err}"

    print("KERNEL_OK")
</pallas_src>

<mosaic_0001>
module attributes {stable_mosaic.version = 11 : i64} {
  func.func @conv_stats_kernel(%arg0: i32, %arg1: memref<512x128xbf16, #tpu.memory_space<vmem>>, %arg2: memref<128x128xbf16, #tpu.memory_space<vmem>>, %arg3: memref<512x128xf32, #tpu.memory_space<vmem>>, %arg4: memref<8x128xf32, #tpu.memory_space<vmem>>) attributes {dimension_semantics = [#tpu.dimension_semantics<parallel>], iteration_bounds = array<i64: 1>, scalar_prefetch = 0 : i64, scratch_operands = 0 : i64, tpu.core_type = #tpu.core_type<tc>, window_params = [{transform_indices = @transform_0, window_bounds = array<i64: 512, 128>}, {pipeline_mode = #tpu.pipeline_mode<synchronous>, transform_indices = @transform_1, window_bounds = array<i64: 128, 128>}, {transform_indices = @transform_2, window_bounds = array<i64: 512, 128>}, {transform_indices = @transform_3, window_bounds = array<i64: 8, 128>}]} {
    %c0 = arith.constant 0 : index
    %c0_0 = arith.constant 0 : index
    %0 = vector.load %arg1[%c0, %c0_0] : memref<512x128xbf16, #tpu.memory_space<vmem>>, vector<512x128xbf16>
    %c0_1 = arith.constant 0 : index
    %c0_2 = arith.constant 0 : index
    %1 = vector.load %arg2[%c0_1, %c0_2] : memref<128x128xbf16, #tpu.memory_space<vmem>>, vector<128x128xbf16>
    %cst = arith.constant dense<0.000000e+00> : vector<512x128xf32>
    %2 = tpu.matmul %0, %1, %cst {dimension_numbers = #tpu.dot_dimension_numbers<[1], [0], [0], [1], [0, 0, 1, 1], [], []>} : vector<512x128xbf16>, vector<128x128xbf16>, vector<512x128xf32> -> vector<512x128xf32>
    %c0_3 = arith.constant 0 : index
    %c0_4 = arith.constant 0 : index
    %3 = vector.load %arg3[%c0_3, %c0_4] : memref<512x128xf32, #tpu.memory_space<vmem>>, vector<512x128xf32>
    tpu.vector_store %arg3[%c0_3, %c0_4], %2 {strides = array<i32>} : memref<512x128xf32, #tpu.memory_space<vmem>>, vector<512x128xf32>,
    %cst_5 = arith.constant dense<0.000000e+00> : vector<128xf32>
    %4 = vector.multi_reduction <add>, %2, %cst_5 [0] : vector<512x128xf32> to vector<128xf32>
    %5 = vector.shape_cast %4 : vector<128xf32> to vector<1x128xf32>
    %6 = arith.mulf %2, %2 : vector<512x128xf32>
    %cst_6 = arith.constant dense<0.000000e+00> : vector<128xf32>
    %7 = vector.multi_reduction <add>, %6, %cst_6 [0] : vector<512x128xf32> to vector<128xf32>
    %8 = vector.shape_cast %7 : vector<128xf32> to vector<1x128xf32>
    %cst_7 = arith.constant 0.000000e+00 : f32
    %9 = vector.broadcast %cst_7 : f32 to vector<6x128xf32>
    %10 = tpu.concatenate %5, %8, %9 in 0 : vector<1x128xf32>, vector<1x128xf32>, vector<6x128xf32> -> vector<8x128xf32>
    %c0_8 = arith.constant 0 : index
    %c0_9 = arith.constant 0 : index
    %11 = vector.load %arg4[%c0_8, %c0_9] : memref<8x128xf32, #tpu.memory_space<vmem>>, vector<8x128xf32>
    tpu.vector_store %arg4[%c0_8, %c0_9], %10 {strides = array<i32>} : memref<8x128xf32, #tpu.memory_space<vmem>>, vector<8x128xf32>,
    return
  }
  func.func @transform_0(%arg0: i32) -> (i32, i32) {
    %c0_i32 = arith.constant 0 : i32
    %c0_i32_0 = arith.constant 0 : i32
    return %arg0, %c0_i32 : i32, i32
  }
  func.func @transform_1(%arg0: i32) -> (i32, i32) {
    %c0_i32 = arith.constant 0 : i32
    %c0_i32_0 = arith.constant 0 : i32
    %c0_i32_1 = arith.constant 0 : i32
    return %c0_i32, %c0_i32_0 : i32, i32
  }
  func.func @transform_2(%arg0: i32) -> (i32, i32) {
    %c0_i32 = arith.constant 0 : i32
    %c0_i32_0 = arith.constant 0 : i32
    return %arg0, %c0_i32 : i32, i32
  }
  func.func @transform_3(%arg0: i32) -> (i32, i32) {
    %c0_i32 = arith.constant 0 : i32
    %c0_i32_0 = arith.constant 0 : i32
    return %arg0, %c0_i32 : i32, i32
  }
}

</mosaic_0001>

<llo_original>
// kernel: tpu_custom_call.1
$region0: #{tpu_custom_call.1}
  #allocation0 [shape = 'u32[]', space=smem, size = 0x4, offset = 0x4, fixed_abs, tag = 'smem constant byte address 0x4 - core index']
  #allocation1 [shape = 'u32[144,128]{1,0:T(1,128)}', space=vmem, size = 0x12000, scoped, tag = 'internal scratch']
  %s0 = inlined_call_operand.hbm [shape: bf16[512,128], index: 0, kind: input, shape index: {}]
  %s1 = inlined_call_operand.hbm [shape: bf16[128,128], index: 1, kind: input, shape index: {}]
  %s2 = inlined_call_operand.hbm [shape: f32[512,128], index: 2, kind: output, shape index: {0}]
  %s3 = inlined_call_operand.hbm [shape: f32[8,128], index: 3, kind: output, shape index: {1}]
  %4 = xla_tuple %s2, %s3
  %s5 = sld [smem:[#allocation0]]
  $region34: #{tpu_custom_call.1} parent=0
    _
  %s7 = ssub.s32 1, %s5
  %s8 = scalar_select 0, %s7, %s5
  $region1: #{tpu_custom_call.1} parent=0
    #allocation2 [shape = 'u8[131072]{0}', space=vmem, size = 0x20000, scoped, tag = 'input window, operand 0, single buffered']
    #allocation3 [shape = 's32[1]{0}', space=sflag, size = 0x4, scoped, tag = 'scoped memory for tpu_custom_call.1']
    #allocation4 [shape = 's32[1]{0}', space=sflag, size = 0x4, scoped, tag = 'scoped memory for tpu_custom_call.1']
    #allocation5 [shape = 'u8[32768]{0}', space=vmem, size = 0x8000, scoped, tag = 'input window, operand 1, single buffered']
    #allocation6 [shape = 's32[1]{0}', space=sflag, size = 0x4, scoped, tag = 'scoped memory for tpu_custom_call.1']
    #allocation7 [shape = 'u8[262144]{0}', space=vmem, size = 0x40000, scoped, tag = 'output window, operand 0, single buffered']
    #allocation8 [shape = 'u8[4096]{0}', space=vmem, size = 0x1000, scoped, tag = 'output window, operand 1, single buffered']
    #allocation9 [shape = 's32[1]{0}', space=sflag, size = 0x4, scoped, tag = 'scoped memory for tpu_custom_call.1']
    %9 = vsyncpa [#allocation3], 0
    %10 = vsyncpa [#allocation6], 0
    %11 = vsyncpa [#allocation4], 0
    %12 = vsyncpa [#allocation9], 0
    // Predicated region
    $region2: #{tpu_custom_call.1} parent=1 // pred_check
      _
    $region3: #{tpu_custom_call.1} parent=1 // pred_check_branch
      %14 = sbr.rel (0) target = $region5
    $region4: #{tpu_custom_call.1} parent=1 // pred_region
      %s16 = ssub.s32 4096, 4096
      %17 = vsyncadd [#allocation3], %s16
      %s18 = sshll.u32 [#allocation2], 4
      %s19 = int_to_ptr.vmem [resolvable:$true] %s18
      %24 = dma.hbm_to_vmem [thread:$0]  %s0, 4096, %s19, [#allocation3], 64, 64, 4
    $region5: #{tpu_custom_call.1} parent=1 // pred_fallthru
      _
    // Predicated region
    $region6: #{tpu_custom_call.1} parent=1 // pred_check
      _
    $region7: #{tpu_custom_call.1} parent=1 // pred_check_branch
      %26 = sbr.rel (0) target = $region9
    $region8: #{tpu_custom_call.1} parent=1 // pred_region
      %s28 = ssub.s32 1024, 1024
      %29 = vsyncadd [#allocation6], %s28
      %s30 = sshll.u32 [#allocation5], 4
      %s31 = int_to_ptr.vmem [resolvable:$true] %s30
      %36 = dma.hbm_to_vmem [thread:$0]  %s1, 1024, %s31, [#allocation6], 64, 64, 4
    $region9: #{tpu_custom_call.1} parent=1 // pred_fallthru
      _
    // Predicated region
    $region10: #{tpu_custom_call.1} parent=1 // pred_check
      _
    $region11: #{tpu_custom_call.1} parent=1 // pred_check_branch
      %38 = sbr.rel (0) target = $region13
    $region12: #{tpu_custom_call.1} parent=1 // pred_region
      %39 = dma.done [#allocation3], 4096
    $region13: #{tpu_custom_call.1} parent=1 // pred_fallthru
      _
    // Predicated region
    $region14: #{tpu_custom_call.1} parent=1 // pred_check
      _
    $region15: #{tpu_custom_call.1} parent=1 // pred_check_branch
      %41 = sbr.rel (0) target = $region17
    $region16: #{tpu_custom_call.1} parent=1 // pred_region
      %42 = dma.done [#allocation6], 1024
    $region17: #{tpu_custom_call.1} parent=1 // pred_fallthru
      _
    %v44 = vld [vmem:[#allocation2] sm:$0xf]
    %v45 = vld [vmem:[#allocation2 + $0x4] sm:$0xf]
    %v46 = vld [vmem:[#allocation2 + $0x8] sm:$0xf]
    %v47 = vld [vmem:[#allocation2 + $0xc] sm:$0xf]
    %v48 = vld [vmem:[#allocation2 + $0x10] sm:$0xf]
    %v49 = vld [vmem:[#allocation2 + $0x14] sm:$0xf]
    %v50 = vld [vmem:[#allocation2 + $0x18] sm:$0xf]
    %v51 = vld [vmem:[#allocation2 + $0x1c] sm:$0xf]
    %v52 = vld [vmem:[#allocation2 + $0x20] sm:$0xf]
    %v53 = vld [vmem:[#allocation2 + $0x24] sm:$0xf]
    %v54 = vld [vmem:[#allocation2 + $0x28] sm:$0xf]
    %v55 = vld [vmem:[#allocation2 + $0x2c] sm:$0xf]
    %v56 = vld [vmem:[#allocation2 + $0x30] sm:$0xf]
    %v57 = vld [vmem:[#allocation2 + $0x34] sm:$0xf]
    %v58 = vld [vmem:[#allocation2 + $0x38] sm:$0xf]
    %v59 = vld [vmem:[#allocation2 + $0x3c] sm:$0xf]
    %v60 = vld [vmem:[#allocation2 + $0x40] sm:$0xf]
    %v61 = vld [vmem:[#allocation2 + $0x44] sm:$0xf]
    %v62 = vld [vmem:[#allocation2 + $0x48] sm:$0xf]
    %v63 = vld [vmem:[#allocation2 + $0x4c] sm:$0xf]
    %v64 = vld [vmem:[#allocation2 + $0x50] sm:$0xf]
    %v65 = vld [vmem:[#allocation2 + $0x54] sm:$0xf]
    %v66 = vld [vmem:[#allocation2 + $0x58] sm:$0xf]
    %v67 = vld [vmem:[#allocation2 + $0x5c] sm:$0xf]
    %v68 = vld [vmem:[#allocation2 + $0x60] sm:$0xf]
    %v69 = vld [vmem:[#allocation2 + $0x64] sm:$0xf]
    %v70 = vld [vmem:[#allocation2 + $0x68] sm:$0xf]
    %v71 = vld [vmem:[#allocation2 + $0x6c] sm:$0xf]
    %v72 = vld [vmem:[#allocation2 + $0x70] sm:$0xf]
    %v73 = vld [vmem:[#allocation2 + $0x74] sm:$0xf]
    %v74 = vld [vmem:[#allocation2 + $0x78] sm:$0xf]
    %v75 = vld [vmem:[#allocation2 + $0x7c] sm:$0xf]
    %v76 = vld [vmem:[#allocation2 + $0x80] sm:$0xf]
    %v77 = vld [vmem:[#allocation2 + $0x84] sm:$0xf]
    %v78 = vld [vmem:[#allocation2 + $0x88] sm:$0xf]
    %v79 = vld [vmem:[#allocation2 + $0x8c] sm:$0xf]
    %v80 = vld [vmem:[#allocation2 + $0x90] sm:$0xf]
    %v81 = vld [vmem:[#allocation2 + $0x94] sm:$0xf]
    %v82 = vld [vmem:[#allocation2 + $0x98] sm:$0xf]
    %v83 = vld [vmem:[#allocation2 + $0x9c] sm:$0xf]
    %v84 = vld [vmem:[#allocation2 + $0xa0] sm:$0xf]
    %v85 = vld [vmem:[#allocation2 + $0xa4] sm:$0xf]
    %v86 = vld [vmem:[#allocation2 + $0xa8] sm:$0xf]
    %v87 = vld [vmem:[#allocation2 + $0xac] sm:$0xf]
    %v88 = vld [vmem:[#allocation2 + $0xb0] sm:$0xf]
    %v89 = vld [vmem:[#allocation2 + $0xb4] sm:$0xf]
    %v90 = vld [vmem:[#allocation2 + $0xb8] sm:$0xf]
    %v91 = vld [vmem:[#allocation2 + $0xbc] sm:$0xf]
    %v92 = vld [vmem:[#allocation2 + $0xc0] sm:$0xf]
    %v93 = vld [vmem:[#allocation2 + $0xc4] sm:$0xf]
    %v94 = vld [vmem:[#allocation2 + $0xc8] sm:$0xf]
    %v95 = vld [vmem:[#allocation2 + $0xcc] sm:$0xf]
    %v96 = vld [vmem:[#allocation2 + $0xd0] sm:$0xf]
    %v97 = vld [vmem:[#allocation2 + $0xd4] sm:$0xf]
    %v98 = vld [vmem:[#allocation2 + $0xd8] sm:$0xf]
    %v99 = vld [vmem:[#allocation2 + $0xdc] sm:$0xf]
    %v100 = vld [vmem:[#allocation2 + $0xe0] sm:$0xf]
    %v101 = vld [vmem:[#allocation2 + $0xe4] sm:$0xf]
    %v102 = vld [vmem:[#allocation2 + $0xe8] sm:$0xf]
    %v103 = vld [vmem:[#allocation2 + $0xec] sm:$0xf]
    %v104 = vld [vmem:[#allocation2 + $0xf0] sm:$0xf]
    %v105 = vld [vmem:[#allocation2 + $0xf4] sm:$0xf]
    %v106 = vld [vmem:[#allocation2 + $0xf8] sm:$0xf]
    %v107 = vld [vmem:[#allocation2 + $0xfc] sm:$0xf]
    %v108 = vld [vmem:[#allocation5] sm:$0xf]
    %v109 = vld [vmem:[#allocation5 + $0x4] sm:$0xf]
    %v110 = vld [vmem:[#allocation5 + $0x8] sm:$0xf]
    %v111 = vld [vmem:[#allocation5 + $0xc] sm:$0xf]
    %v112 = vld [vmem:[#allocation5 + $0x10] sm:$0xf]
    %v113 = vld [vmem:[#allocation5 + $0x14] sm:$0xf]
    %v114 = vld [vmem:[#allocation5 + $0x18] sm:$0xf]
    %v115 = vld [vmem:[#allocation5 + $0x1c] sm:$0xf]
    %v116 = vld [vmem:[#allocation5 + $0x20] sm:$0xf]
    %v117 = vld [vmem:[#allocation5 + $0x24] sm:$0xf]
    %v118 = vld [vmem:[#allocation5 + $0x28] sm:$0xf]
    %v119 = vld [vmem:[#allocation5 + $0x2c] sm:$0xf]
    %v120 = vld [vmem:[#allocation5 + $0x30] sm:$0xf]
    %v121 = vld [vmem:[#allocation5 + $0x34] sm:$0xf]
    %v122 = vld [vmem:[#allocation5 + $0x38] sm:$0xf]
    %v123 = vld [vmem:[#allocation5 + $0x3c] sm:$0xf]
    %v188 = vunpack.c.l.b16 %v44
    %v189 = vunpack.c.l.b16 %v45
    %v190 = vunpack.c.l.b16 %v46
    %v191 = vunpack.c.l.b16 %v47
    %v192 = vunpack.c.l.b16 %v48
    %v193 = vunpack.c.l.b16 %v49
    %v194 = vunpack.c.l.b16 %v50
    %v195 = vunpack.c.l.b16 %v51
    %v196 = vunpack.c.l.b16 %v52
    %v197 = vunpack.c.l.b16 %v53
    %v198 = vunpack.c.l.b16 %v54
    %v199 = vunpack.c.l.b16 %v55
    %v200 = vunpack.c.l.b16 %v56
    %v201 = vunpack.c.l.b16 %v57
    %v202 = vunpack.c.l.b16 %v58
    %v203 = vunpack.c.l.b16 %v59
    %v204 = vunpack.c.l.b16 %v60
    %v205 = vunpack.c.l.b16 %v61
    %v206 = vunpack.c.l.b16 %v62
    %v207 = vunpack.c.l.b16 %v63
    %v208 = vunpack.c.l.b16 %v64
    %v209 = vunpack.c.l.b16 %v65
    %v210 = vunpack.c.l.b16 %v66
    %v211 = vunpack.c.l.b16 %v67
    %v212 = vunpack.c.l.b16 %v68
    %v213 = vunpack.c.l.b16 %v69
    %v214 = vunpack.c.l.b16 %v70
    %v215 = vunpack.c.l.b16 %v71
    %v216 = vunpack.c.l.b16 %v72
    %v217 = vunpack.c.l.b16 %v73
    %v218 = vunpack.c.l.b16 %v74
    %v219 = vunpack.c.l.b16 %v75
    %v220 = vunpack.c.l.b16 %v76
    %v221 = vunpack.c.l.b16 %v77
    %v222 = vunpack.c.l.b16 %v78
    %v223 = vunpack.c.l.b16 %v79
    %v224 = vunpack.c.l.b16 %v80
    %v225 = vunpack.c.l.b16 %v81
    %v226 = vunpack.c.l.b16 %v82
    %v227 = vunpack.c.l.b16 %v83
    %v228 = vunpack.c.l.b16 %v84
    %v229 = vunpack.c.l.b16 %v85
    %v230 = vunpack.c.l.b16 %v86
    %v231 = vunpack.c.l.b16 %v87
    %v232 = vunpack.c.l.b16 %v88
    %v233 = vunpack.c.l.b16 %v89
    %v234 = vunpack.c.l.b16 %v90
    %v235 = vunpack.c.l.b16 %v91
    %v236 = vunpack.c.l.b16 %v92
    %v237 = vunpack.c.l.b16 %v93
    %v238 = vunpack.c.l.b16 %v94
    %v239 = vunpack.c.l.b16 %v95
    %v240 = vunpack.c.l.b16 %v96
    %v241 = vunpack.c.l.b16 %v97
    %v242 = vunpack.c.l.b16 %v98
    %v243 = vunpack.c.l.b16 %v99
    %v244 = vunpack.c.l.b16 %v100
    %v245 = vunpack.c.l.b16 %v101
    %v246 = vunpack.c.l.b16 %v102
    %v247 = vunpack.c.l.b16 %v103
    %v248 = vunpack.c.l.b16 %v104
    %v249 = vunpack.c.l.b16 %v105
    %v250 = vunpack.c.l.b16 %v106
    %v251 = vunpack.c.l.b16 %v107
    %v252 = vpack.c.b16 %v189, %v188
    %v253 = vpack.c.b16 %v191, %v190
    %v254 = vpack.c.b16 %v193, %v192
    %v255 = vpack.c.b16 %v195, %v194
    %v256 = vpack.c.b16 %v197, %v196
    %v257 = vpack.c.b16 %v199, %v198
    %v258 = vpack.c.b16 %v201, %v200
    %v259 = vpack.c.b16 %v203, %v202
    %v260 = vpack.c.b16 %v205, %v204
    %v261 = vpack.c.b16 %v207, %v206
    %v262 = vpack.c.b16 %v209, %v208
    %v263 = vpack.c.b16 %v211, %v210
    %v264 = vpack.c.b16 %v213, %v212
    %v265 = vpack.c.b16 %v215, %v214
    %v266 = vpack.c.b16 %v217, %v216
    %v267 = vpack.c.b16 %v219, %v218
    %v268 = vpack.c.b16 %v221, %v220
    %v269 = vpack.c.b16 %v223, %v222
    %v270 = vpack.c.b16 %v225, %v224
    %v271 = vpack.c.b16 %v227, %v226
    %v272 = vpack.c.b16 %v229, %v228
    %v273 = vpack.c.b16 %v231, %v230
    %v274 = vpack.c.b16 %v233, %v232
    %v275 = vpack.c.b16 %v235, %v234
    %v276 = vpack.c.b16 %v237, %v236
    %v277 = vpack.c.b16 %v239, %v238
    %v278 = vpack.c.b16 %v241, %v240
    %v279 = vpack.c.b16 %v243, %v242
    %v280 = vpack.c.b16 %v245, %v244
    %v281 = vpack.c.b16 %v247, %v246
    %v282 = vpack.c.b16 %v249, %v248
    %v283 = vpack.c.b16 %v251, %v250
    %v332 = vunpack.c.l.b16 %v108
    %v333 = vunpack.c.l.b16 %v109
    %v334 = vunpack.c.l.b16 %v110
    %v335 = vunpack.c.l.b16 %v111
    %v336 = vunpack.c.l.b16 %v112
    %v337 = vunpack.c.l.b16 %v113
    %v338 = vunpack.c.l.b16 %v114
    %v339 = vunpack.c.l.b16 %v115
    %v340 = vunpack.c.l.b16 %v116
    %v341 = vunpack.c.l.b16 %v117
    %v342 = vunpack.c.l.b16 %v118
    %v343 = vunpack.c.l.b16 %v119
    %v344 = vunpack.c.l.b16 %v120
    %v345 = vunpack.c.l.b16 %v121
    %v346 = vunpack.c.l.b16 %v122
    %v347 = vunpack.c.l.b16 %v123
    %v348 = vpack.c.b16 %v333, %v332
    %v349 = vpack.c.b16 %v335, %v334
    %v350 = vpack.c.b16 %v337, %v336
    %v351 = vpack.c.b16 %v339, %v338
    %v352 = vpack.c.b16 %v341, %v340
    %v353 = vpack.c.b16 %v343, %v342
    %v354 = vpack.c.b16 %v345, %v344
    %v355 = vpack.c.b16 %v347, %v346
    %364 = vmatprep.subr.bf16.mxu0 0
    %365 = vmatpush1.bf16.msra.mxu0 %v348
    %366 = vmatprep.subr.bf16.mxu0 0
    %367 = vmatpush1.bf16.msra.mxu0 %v349
    %368 = vmatprep.subr.bf16.mxu0 0
    %369 = vmatpush1.bf16.msra.mxu0 %v350
    %370 = vmatprep.subr.bf16.mxu0 0
    %371 = vmatpush1.bf16.msra.mxu0 %v351
    %372 = vmatprep.subr.bf16.mxu0 0
    %373 = vmatpush1.bf16.msra.mxu0 %v352
    %374 = vmatprep.subr.bf16.mxu0 0
    %375 = vmatpush1.bf16.msra.mxu0 %v353
    %376 = vmatprep.subr.bf16.mxu0 0
    %377 = vmatpush1.bf16.msra.mxu0 %v354
    %378 = vmatprep.subr.bf16.mxu0 0
    %379 = vmatpush1.bf16.msra.mxu0 %v355
    %380 = vmatprep.subr.bf16.mxu0 0
    %381 = vmatpush1.bf16.msra.mxu0 0
    %382 = vmatprep.subr.bf16.mxu0 0
    %383 = vmatpush1.bf16.msra.mxu0 0
    %384 = vmatprep.subr.bf16.mxu0 0
    %385 = vmatpush1.bf16.msra.mxu0 0
    %386 = vmatprep.subr.bf16.mxu0 0
    %387 = vmatpush1.bf16.msra.mxu0 0
    %388 = vmatprep.subr.bf16.mxu0 0
    %389 = vmatpush1.bf16.msra.mxu0 0
    %390 = vmatprep.subr.bf16.mxu0 0
    %391 = vmatpush1.bf16.msra.mxu0 0
    %392 = vmatprep.subr.bf16.mxu0 0
    %393 = vmatpush1.bf16.msra.mxu0 0
    %394 = vmatprep.subr.bf16.mxu0 0
    %395 = vmatpush1.bf16.msra.mxu0 0
    %396 = vmatprep.mubr.bf16.mxu0 0
    %397 = vmatmul.mubr.bf16.gmra.mrb[0].mxu0 %v252
    %v398 = vpop.f32.mrb[0].mxu0
    %v399 = vadd.f32 0.0, %v398
    %v400 = vpop.f32.mrb[0].mxu0
    %v401 = vpop.f32.mrb[0].mxu0
    %v402 = vadd.f32 0.0, %v401
    %v403 = vpop.f32.mrb[0].mxu0
    %404 = vmatprep.mubr.bf16.mxu0 0
    %405 = vmatmul.mubr.bf16.gmra.mrb[0].mxu0 %v253
    %v406 = vpop.f32.mrb[0].mxu0
    %v407 = vadd.f32 0.0, %v406
    %v408 = vpop.f32.mrb[0].mxu0
    %v409 = vpop.f32.mrb[0].mxu0
    %v410 = vadd.f32 0.0, %v409
    %v411 = vpop.f32.mrb[0].mxu0
    %412 = vmatprep.mubr.bf16.mxu0 0
    %413 = vmatmul.mubr.bf16.gmra.mrb[0].mxu0 %v254
    %v414 = vpop.f32.mrb[0].mxu0
    %v415 = vadd.f32 0.0, %v414
    %v416 = vpop.f32.mrb[0].mxu0
    %v417 = vpop.f32.mrb[0].mxu0
    %v418 = vadd.f32 0.0, %v417
    %v419 = vpop.f32.mrb[0].mxu0
    %420 = vmatprep.mubr.bf16.mxu0 0
    %421 = vmatmul.mubr.bf16.gmra.mrb[0].mxu0 %v255
    %v422 = vpop.f32.mrb[0].mxu0
    %v423 = vadd.f32 0.0, %v422
    %v424 = vpop.f32.mrb[0].mxu0
    %v425 = vpop.f32.mrb[0].mxu0
    %v426 = vadd.f32 0.0, %v425
    %v427 = vpop.f32.mrb[0].mxu0
    %428 = vmatprep.mubr.bf16.mxu0 0
    %429 = vmatmul.mubr.bf16.gmra.mrb[0].mxu0 %v256
    %v430 = vpop.f32.mrb[0].mxu0
    %v431 = vadd.f32 0.0, %v430
    %v432 = vpop.f32.mrb[0].mxu0
    %v433 = vpop.f32.mrb[0].mxu0
    %v434 = vadd.f32 0.0, %v433
    %v435 = vpop.f32.mrb[0].mxu0
    %436 = vmatprep.mubr.bf16.mxu0 0
    %437 = vmatmul.mubr.bf16.gmra.mrb[0].mxu0 %v257
    %v438 = vpop.f32.mrb[0].mxu0
    %v439 = vadd.f32 0.0, %v438
    %v440 = vpop.f32.mrb[0].mxu0
    %v441 = vpop.f32.mrb[0].mxu0
    %v442 = vadd.f32 0.0, %v441
    %v443 = vpop.f32.mrb[0].mxu0
    %444 = vmatprep.mubr.bf16.mxu0 0
    %445 = vmatmul.mubr.bf16.gmra.mrb[0].mxu0 %v258
    %v446 = vpop.f32.mrb[0].mxu0
    %v447 = vadd.f32 0.0, %v446
    %v448 = vpop.f32.mrb[0].mxu0
    %v449 = vpop.f32.mrb[0].mxu0
    %v450 = vadd.f32 0.0, %v449
    %v451 = vpop.f32.mrb[0].mxu0
    %452 = vmatprep.mubr.bf16.mxu0 0
    %453 = vmatmul.mubr.bf16.gmra.mrb[0].mxu0 %v259
    %v454 = vpop.f32.mrb[0].mxu0
    %v455 = vadd.f32 0.0, %v454
    %v456 = vpop.f32.mrb[0].mxu0
    %v457 = vpop.f32.mrb[0].mxu0
    %v458 = vadd.f32 0.0, %v457
    %v459 = vpop.f32.mrb[0].mxu0
    %460 = vmatprep.mubr.bf16.mxu0 0
    %461 = vmatmul.mubr.bf16.gmra.mrb[0].mxu0 %v260
    %v462 = vpop.f32.mrb[0].mxu0
    %v463 = vadd.f32 0.0, %v462
    %v464 = vpop.f32.mrb[0].mxu0
    %v465 = vpop.f32.mrb[0].mxu0
    %v466 = vadd.f32 0.0, %v465
    %v467 = vpop.f32.mrb[0].mxu0
    %468 = vmatprep.mubr.bf16.mxu0 0
    %469 = vmatmul.mubr.bf16.gmra.mrb[0].mxu0 %v261
    %v470 = vpop.f32.mrb[0].mxu0
    %v471 = vadd.f32 0.0, %v470
    %v472 = vpop.f32.mrb[0].mxu0
    %v473 = vpop.f32.mrb[0].mxu0
    %v474 = vadd.f32 0.0, %v473
    %v475 = vpop.f32.mrb[0].mxu0
    %476 = vmatprep.mubr.bf16.mxu0 0
    %477 = vmatmul.mubr.bf16.gmra.mrb[0].mxu0 %v262
    %v478 = vpop.f32.mrb[0].mxu0
    %v479 = vadd.f32 0.0, %v478
    %v480 = vpop.f32.mrb[0].mxu0
    %v481 = vpop.f32.mrb[0].mxu0
    %v482 = vadd.f32 0.0, %v481
    %v483 = vpop.f32.mrb[0].mxu0
    %484 = vmatprep.mubr.bf16.mxu0 0
    %485 = vmatmul.mubr.bf16.gmra.mrb[0].mxu0 %v263
    %v486 = vpop.f32.mrb[0].mxu0
    %v487 = vadd.f32 0.0, %v486
    %v488 = vpop.f32.mrb[0].mxu0
    %v489 = vpop.f32.mrb[0].mxu0
    %v490 = vadd.f32 0.0, %v489
    %v491 = vpop.f32.mrb[0].mxu0
    %492 = vmatprep.mubr.bf16.mxu0 0
    %493 = vmatmul.mubr.bf16.gmra.mrb[0].mxu0 %v264
    %v494 = vpop.f32.mrb[0].mxu0
    %v495 = vadd.f32 0.0, %v494
    %v496 = vpop.f32.mrb[0].mxu0
    %v497 = vpop.f32.mrb[0].mxu0
    %v498 = vadd.f32 0.0, %v497
    %v499 = vpop.f32.mrb[0].mxu0
    %500 = vmatprep.mubr.bf16.mxu0 0
    %501 = vmatmul.mubr.bf16.gmra.mrb[0].mxu0 %v265
    %v502 = vpop.f32.mrb[0].mxu0
    %v503 = vadd.f32 0.0, %v502
    %v504 = vpop.f32.mrb[0].mxu0
    %v505 = vpop.f32.mrb[0].mxu0
    %v506 = vadd.f32 0.0, %v505
    %v507 = vpop.f32.mrb[0].mxu0
    %508 = vmatprep.mubr.bf16.mxu0 0
    %509 = vmatmul.mubr.bf16.gmra.mrb[0].mxu0 %v266
    %v510 = vpop.f32.mrb[0].mxu0
    %v511 = vadd.f32 0.0, %v510
    %v512 = vpop.f32.mrb[0].mxu0
    %v513 = vpop.f32.mrb[0].mxu0
    %v514 = vadd.f32 0.0, %v513
    %v515 = vpop.f32.mrb[0].mxu0
    %516 = vmatprep.mubr.bf16.mxu0 0
    %517 = vmatmul.mubr.bf16.gmra.mrb[0].mxu0 %v267
    %v518 = vpop.f32.mrb[0].mxu0
    %v519 = vadd.f32 0.0, %v518
    %v520 = vpop.f32.mrb[0].mxu0
    %v521 = vpop.f32.mrb[0].mxu0
    %v522 = vadd.f32 0.0, %v521
    %v523 = vpop.f32.mrb[0].mxu0
    %524 = vmatprep.mubr.bf16.mxu0 0
    %525 = vmatmul.mubr.bf16.gmra.mrb[0].mxu0 %v268
    %v526 = vpop.f32.mrb[0].mxu0
    %v527 = vadd.f32 0.0, %v526
    %v528 = vpop.f32.mrb[0].mxu0
    %v529 = vpop.f32.mrb[0].mxu0
    %v530 = vadd.f32 0.0, %v529
    %v531 = vpop.f32.mrb[0].mxu0
    %532 = vmatprep.mubr.bf16.mxu0 0
    %533 = vmatmul.mubr.bf16.gmra.mrb[0].mxu0 %v269
    %v534 = vpop.f32.mrb[0].mxu0
    %v535 = vadd.f32 0.0, %v534
    %v536 = vpop.f32.mrb[0].mxu0
    %v537 = vpop.f32.mrb[0].mxu0
    %v538 = vadd.f32 0.0, %v537
    %v539 = vpop.f32.mrb[0].mxu0
    %540 = vmatprep.mubr.bf16.mxu0 0
    %541 = vmatmul.mubr.bf16.gmra.mrb[0].mxu0 %v270
    %v542 = vpop.f32.mrb[0].mxu0
    %v543 = vadd.f32 0.0, %v542
    %v544 = vpop.f32.mrb[0].mxu0
    %v545 = vpop.f32.mrb[0].mxu0
    %v546 = vadd.f32 0.0, %v545
    %v547 = vpop.f32.mrb[0].mxu0
    %548 = vmatprep.mubr.bf16.mxu0 0
    %549 = vmatmul.mubr.bf16.gmra.mrb[0].mxu0 %v271
    %v550 = vpop.f32.mrb[0].mxu0
    %v551 = vadd.f32 0.0, %v550
    %v552 = vpop.f32.mrb[0].mxu0
    %v553 = vpop.f32.mrb[0].mxu0
    %v554 = vadd.f32 0.0, %v553
    %v555 = vpop.f32.mrb[0].mxu0
    %556 = vmatprep.mubr.bf16.mxu0 0
    %557 = vmatmul.mubr.bf16.gmra.mrb[0].mxu0 %v272
    %v558 = vpop.f32.mrb[0].mxu0
    %v559 = vadd.f32 0.0, %v558
    %v560 = vpop.f32.mrb[0].mxu0
    %v561 = vpop.f32.mrb[0].mxu0
    %v562 = vadd.f32 0.0, %v561
    %v563 = vpop.f32.mrb[0].mxu0
    %564 = vmatprep.mubr.bf16.mxu0 0
    %565 = vmatmul.mubr.bf16.gmra.mrb[0].mxu0 %v273
    %v566 = vpop.f32.mrb[0].mxu0
    %v567 = vadd.f32 0.0, %v566
    %v568 = vpop.f32.mrb[0].mxu0
    %v569 = vpop.f32.mrb[0].mxu0
    %v570 = vadd.f32 0.0, %v569
    %v571 = vpop.f32.mrb[0].mxu0
    %572 = vmatprep.mubr.bf16.mxu0 0
    %573 = vmatmul.mubr.bf16.gmra.mrb[0].mxu0 %v274
    %v574 = vpop.f32.mrb[0].mxu0
    %v575 = vadd.f32 0.0, %v574
    %v576 = vpop.f32.mrb[0].mxu0
    %v577 = vpop.f32.mrb[0].mxu0
    %v578 = vadd.f32 0.0, %v577
    %v579 = vpop.f32.mrb[0].mxu0
    %580 = vmatprep.mubr.bf16.mxu0 0
    %581 = vmatmul.mubr.bf16.gmra.mrb[0].mxu0 %v275
    %v582 = vpop.f32.mrb[0].mxu0
    %v583 = vadd.f32 0.0, %v582
    %v584 = vpop.f32.mrb[0].mxu0
    %v585 = vpop.f32.mrb[0].mxu0
    %v586 = vadd.f32 0.0, %v585
    %v587 = vpop.f32.mrb[0].mxu0
    %588 = vmatprep.mubr.bf16.mxu0 0
    %589 = vmatmul.mubr.bf16.gmra.mrb[0].mxu0 %v276
    %v590 = vpop.f32.mrb[0].mxu0
    %v591 = vadd.f32 0.0, %v590
    %v592 = vpop.f32.mrb[0].mxu0
    %v593 = vpop.f32.mrb[0].mxu0
    %v594 = vadd.f32 0.0, %v593
    %v595 = vpop.f32.mrb[0].mxu0
    %596 = vmatprep.mubr.bf16.mxu0 0
    %597 = vmatmul.mubr.bf16.gmra.mrb[0].mxu0 %v277
    %v598 = vpop.f32.mrb[0].mxu0
    %v599 = vadd.f32 0.0, %v598
    %v600 = vpop.f32.mrb[0].mxu0
    %v601 = vpop.f32.mrb[0].mxu0
    %v602 = vadd.f32 0.0, %v601
    %v603 = vpop.f32.mrb[0].mxu0
    %604 = vmatprep.mubr.bf16.mxu0 0
    %605 = vmatmul.mubr.bf16.gmra.mrb[0].mxu0 %v278
    %v606 = vpop.f32.mrb[0].mxu0
    %v607 = vadd.f32 0.0, %v606
    %v608 = vpop.f32.mrb[0].mxu0
    %v609 = vpop.f32.mrb[0].mxu0
    %v610 = vadd.f32 0.0, %v609
    %v611 = vpop.f32.mrb[0].mxu0
    %612 = vmatprep.mubr.bf16.mxu0 0
    %613 = vmatmul.mubr.bf16.gmra.mrb[0].mxu0 %v279
    %v614 = vpop.f32.mrb[0].mxu0
    %v615 = vadd.f32 0.0, %v614
    %v616 = vpop.f32.mrb[0].mxu0
    %v617 = vpop.f32.mrb[0].mxu0
    %v618 = vadd.f32 0.0, %v617
    %v619 = vpop.f32.mrb[0].mxu0
    %620 = vmatprep.mubr.bf16.mxu0 0
    %621 = vmatmul.mubr.bf16.gmra.mrb[0].mxu0 %v280
    %v622 = vpop.f32.mrb[0].mxu0
    %v623 = vadd.f32 0.0, %v622
    %v624 = vpop.f32.mrb[0].mxu0
    %v625 = vpop.f32.mrb[0].mxu0
    %v626 = vadd.f32 0.0, %v625
    %v627 = vpop.f32.mrb[0].mxu0
    %628 = vmatprep.mubr.bf16.mxu0 0
    %629 = vmatmul.mubr.bf16.gmra.mrb[0].mxu0 %v281
    %v630 = vpop.f32.mrb[0].mxu0
    %v631 = vadd.f32 0.0, %v630
    %v632 = vpop.f32.mrb[0].mxu0
    %v633 = vpop.f32.mrb[0].mxu0
    %v634 = vadd.f32 0.0, %v633
    %v635 = vpop.f32.mrb[0].mxu0
    %636 = vmatprep.mubr.bf16.mxu0 0
    %637 = vmatmul.mubr.bf16.gmra.mrb[0].mxu0 %v282
    %v638 = vpop.f32.mrb[0].mxu0
    %v639 = vadd.f32 0.0, %v638
    %v640 = vpop.f32.mrb[0].mxu0
    %v641 = vpop.f32.mrb[0].mxu0
    %v642 = vadd.f32 0.0, %v641
    %v643 = vpop.f32.mrb[0].mxu0
    %644 = vmatprep.mubr.bf16.mxu0 0
    %645 = vmatmul.mubr.bf16.gmra.mrb[0].mxu0 %v283
    %v646 = vpop.f32.mrb[0].mxu0
    %v647 = vadd.f32 0.0, %v646
    %v648 = vpop.f32.mrb[0].mxu0
    %v649 = vpop.f32.mrb[0].mxu0
    %v650 = vadd.f32 0.0, %v649
    %v651 = vpop.f32.mrb[0].mxu0
    %652 = vdwg.mxu0
    %653 = vst [vmem:[#allocation7] sm:$0xff] %v399
    %654 = vst [vmem:[#allocation7 + $0x8] sm:$0xff] %v402
    %655 = vst [vmem:[#allocation7 + $0x10] sm:$0xff] %v407
    %656 = vst [vmem:[#allocation7 + $0x18] sm:$0xff] %v410
    %657 = vst [vmem:[#allocation7 + $0x20] sm:$0xff] %v415
    %658 = vst [vmem:[#allocation7 + $0x28] sm:$0xff] %v418
    %659 = vst [vmem:[#allocation7 + $0x30] sm:$0xff] %v423
    %660 = vst [vmem:[#allocation7 + $0x38] sm:$0xff] %v426
    %661 = vst [vmem:[#allocation7 + $0x40] sm:$0xff] %v431
    %662 = vst [vmem:[#allocation7 + $0x48] sm:$0xff] %v434
    %663 = vst [vmem:[#allocation7 + $0x50] sm:$0xff] %v439
    %664 = vst [vmem:[#allocation7 + $0x58] sm:$0xff] %v442
    %665 = vst [vmem:[#allocation7 + $0x60] sm:$0xff] %v447
    %666 = vst [vmem:[#allocation7 + $0x68] sm:$0xff] %v450
    %667 = vst [vmem:[#allocation7 + $0x70] sm:$0xff] %v455
    %668 = vst [vmem:[#allocation7 + $0x78] sm:$0xff] %v458
    %669 = vst [vmem:[#allocation7 + $0x80] sm:$0xff] %v463
    %670 = vst [vmem:[#allocation7 + $0x88] sm:$0xff] %v466
    %671 = vst [vmem:[#allocation7 + $0x90] sm:$0xff] %v471
    %672 = vst [vmem:[#allocation7 + $0x98] sm:$0xff] %v474
    %673 = vst [vmem:[#allocation7 + $0xa0] sm:$0xff] %v479
    %674 = vst [vmem:[#allocation7 + $0xa8] sm:$0xff] %v482
    %675 = vst [vmem:[#allocation7 + $0xb0] sm:$0xff] %v487
    %676 = vst [vmem:[#allocation7 + $0xb8] sm:$0xff] %v490
    %677 = vst [vmem:[#allocation7 + $0xc0] sm:$0xff] %v495
    %678 = vst [vmem:[#allocation7 + $0xc8] sm:$0xff] %v498
    %679 = vst [vmem:[#allocation7 + $0xd0] sm:$0xff] %v503
    %680 = vst [vmem:[#allocation7 + $0xd8] sm:$0xff] %v506
    %681 = vst [vmem:[#allocation7 + $0xe0] sm:$0xff] %v511
    %682 = vst [vmem:[#allocation7 + $0xe8] sm:$0xff] %v514
    %683 = vst [vmem:[#allocation7 + $0xf0] sm:$0xff] %v519
    %684 = vst [vmem:[#allocation7 + $0xf8] sm:$0xff] %v522
    %685 = vst [vmem:[#allocation7 + $0x100] sm:$0xff] %v527
    %686 = vst [vmem:[#allocation7 + $0x108] sm:$0xff] %v530
    %687 = vst [vmem:[#allocation7 + $0x110] sm:$0xff] %v535
    %688 = vst [vmem:[#allocation7 + $0x118] sm:$0xff] %v538
    %689 = vst [vmem:[#allocation7 + $0x120] sm:$0xff] %v543
    %690 = vst [vmem:[#allocation7 + $0x128] sm:$0xff] %v546
    %691 = vst [vmem:[#allocation7 + $0x130] sm:$0xff] %v551
    %692 = vst [vmem:[#allocation7 + $0x138] sm:$0xff] %v554
    %693 = vst [vmem:[#allocation7 + $0x140] sm:$0xff] %v559
    %694 = vst [vmem:[#allocation7 + $0x148] sm:$0xff] %v562
    %695 = vst [vmem:[#allocation7 + $0x150] sm:$0xff] %v567
    %696 = vst [vmem:[#allocation7 + $0x158] sm:$0xff] %v570
    %697 = vst [vmem:[#allocation7 + $0x160] sm:$0xff] %v575
    %698 = vst [vmem:[#allocation7 + $0x168] sm:$0xff] %v578
    %699 = vst [vmem:[#allocation7 + $0x170] sm:$0xff] %v583
    %700 = vst [vmem:[#allocation7 + $0x178] sm:$0xff] %v586
    %701 = vst [vmem:[#allocation7 + $0x180] sm:$0xff] %v591
    %702 = vst [vmem:[#allocation7 + $0x188] sm:$0xff] %v594
    %703 = vst [vmem:[#allocation7 + $0x190] sm:$0xff] %v599
    %704 = vst [vmem:[#allocation7 + $0x198] sm:$0xff] %v602
    %705 = vst [vmem:[#allocation7 + $0x1a0] sm:$0xff] %v607
    %706 = vst [vmem:[#allocation7 + $0x1a8] sm:$0xff] %v610
    %707 = vst [vmem:[#allocation7 + $0x1b0] sm:$0xff] %v615
    %708 = vst [vmem:[#allocation7 + $0x1b8] sm:$0xff] %v618
    %709 = vst [vmem:[#allocation7 + $0x1c0] sm:$0xff] %v623
    %710 = vst [vmem:[#allocation7 + $0x1c8] sm:$0xff] %v626
    %711 = vst [vmem:[#allocation7 + $0x1d0] sm:$0xff] %v631
    %712 = vst [vmem:[#allocation7 + $0x1d8] sm:$0xff] %v634
    %713 = vst [vmem:[#allocation7 + $0x1e0] sm:$0xff] %v639
    %714 = vst [vmem:[#allocation7 + $0x1e8] sm:$0xff] %v642
    %715 = vst [vmem:[#allocation7 + $0x1f0] sm:$0xff] %v647
    %716 = vst [vmem:[#allocation7 + $0x1f8] sm:$0xff] %v650
    %v717 = vadd.f32 %v399, %v402
    %v718 = vadd.f32 %v717, %v407
    %v719 = vadd.f32 %v718, %v410
    %v720 = vadd.f32 %v719, %v415
    %v721 = vadd.f32 %v720, %v418
    %v722 = vadd.f32 %v721, %v423
    %v723 = vadd.f32 %v722, %v426
    %v724 = vadd.f32 %v723, %v431
    %v725 = vadd.f32 %v724, %v434
    %v726 = vadd.f32 %v725, %v439
    %v727 = vadd.f32 %v726, %v442
    %v728 = vadd.f32 %v727, %v447
    %v729 = vadd.f32 %v728, %v450
    %v730 = vadd.f32 %v729, %v455
    %v731 = vadd.f32 %v730, %v458
    %v732 = vadd.f32 %v731, %v463
    %v733 = vadd.f32 %v732, %v466
    %v734 = vadd.f32 %v733, %v471
    %v735 = vadd.f32 %v734, %v474
    %v736 = vadd.f32 %v735, %v479
    %v737 = vadd.f32 %v736, %v482
    %v738 = vadd.f32 %v737, %v487
    %v739 = vadd.f32 %v738, %v490
    %v740 = vadd.f32 %v739, %v495
    %v741 = vadd.f32 %v740, %v498
    %v742 = vadd.f32 %v741, %v503
    %v743 = vadd.f32 %v742, %v506
    %v744 = vadd.f32 %v743, %v511
    %v745 = vadd.f32 %v744, %v514
    %v746 = vadd.f32 %v745, %v519
    %v747 = vadd.f32 %v746, %v522
    %v748 = vadd.f32 %v747, %v527
    %v749 = vadd.f32 %v748, %v530
    %v750 = vadd.f32 %v749, %v535
    %v751 = vadd.f32 %v750, %v538
    %v752 = vadd.f32 %v751, %v543
    %v753 = vadd.f32 %v752, %v546
    %v754 = vadd.f32 %v753, %v551
    %v755 = vadd.f32 %v754, %v554
    %v756 = vadd.f32 %v755, %v559
    %v757 = vadd.f32 %v756, %v562
    %v758 = vadd.f32 %v757, %v567
    %v759 = vadd.f32 %v758, %v570
    %v760 = vadd.f32 %v759, %v575
    %v761 = vadd.f32 %v760, %v578
    %v762 = vadd.f32 %v761, %v583
    %v763 = vadd.f32 %v762, %v586
    %v764 = vadd.f32 %v763, %v591
    %v765 = vadd.f32 %v764, %v594
    %v766 = vadd.f32 %v765, %v599
    %v767 = vadd.f32 %v766, %v602
    %v768 = vadd.f32 %v767, %v607
    %v769 = vadd.f32 %v768, %v610
    %v770 = vadd.f32 %v769, %v615
    %v771 = vadd.f32 %v770, %v618
    %v772 = vadd.f32 %v771, %v623
    %v773 = vadd.f32 %v772, %v626
    %v774 = vadd.f32 %v773, %v631
    %v775 = vadd.f32 %v774, %v634
    %v776 = vadd.f32 %v775, %v639
    %v777 = vadd.f32 %v776, %v642
    %v778 = vadd.f32 %v777, %v647
    %v779 = vadd.f32 %v778, %v650
    %v780 = vrot.slane %v779, 4
    %v781 = vadd.f32 %v779, %v780
    %v782 = vrot.slane %v781, 2
    %v783 = vadd.f32 %v781, %v782
    %v784 = vrot.slane %v783, 1
    %v785 = vadd.f32 %v783, %v784
    %v786 = vmul.f32 %v399, %v399
    %v787 = vmul.f32 %v402, %v402
    %v788 = vmul.f32 %v407, %v407
    %v789 = vmul.f32 %v410, %v410
    %v790 = vmul.f32 %v415, %v415
    %v791 = vmul.f32 %v418, %v418
    %v792 = vmul.f32 %v423, %v423
    %v793 = vmul.f32 %v426, %v426
    %v794 = vmul.f32 %v431, %v431
    %v795 = vmul.f32 %v434, %v434
    %v796 = vmul.f32 %v439, %v439
    %v797 = vmul.f32 %v442, %v442
    %v798 = vmul.f32 %v447, %v447
    %v799 = vmul.f32 %v450, %v450
    %v800 = vmul.f32 %v455, %v455
    %v801 = vmul.f32 %v458, %v458
    %v802 = vmul.f32 %v463, %v463
    %v803 = vmul.f32 %v466, %v466
    %v804 = vmul.f32 %v471, %v471
    %v805 = vmul.f32 %v474, %v474
    %v806 = vmul.f32 %v479, %v479
    %v807 = vmul.f32 %v482, %v482
    %v808 = vmul.f32 %v487, %v487
    %v809 = vmul.f32 %v490, %v490
    %v810 = vmul.f32 %v495, %v495
    %v811 = vmul.f32 %v498, %v498
    %v812 = vmul.f32 %v503, %v503
    %v813 = vmul.f32 %v506, %v506
    %v814 = vmul.f32 %v511, %v511
    %v815 = vmul.f32 %v514, %v514
    %v816 = vmul.f32 %v519, %v519
    %v817 = vmul.f32 %v522, %v522
    %v818 = vmul.f32 %v527, %v527
    %v819 = vmul.f32 %v530, %v530
    %v820 = vmul.f32 %v535, %v535
    %v821 = vmul.f32 %v538, %v538
    %v822 = vmul.f32 %v543, %v543
    %v823 = vmul.f32 %v546, %v546
    %v824 = vmul.f32 %v551, %v551
    %v825 = vmul.f32 %v554, %v554
    %v826 = vmul.f32 %v559, %v559
    %v827 = vmul.f32 %v562, %v562
    %v828 = vmul.f32 %v567, %v567
    %v829 = vmul.f32 %v570, %v570
    %v830 = vmul.f32 %v575, %v575
    %v831 = vmul.f32 %v578, %v578
    %v832 = vmul.f32 %v583, %v583
    %v833 = vmul.f32 %v586, %v586
    %v834 = vmul.f32 %v591, %v591
    %v835 = vmul.f32 %v594, %v594
    %v836 = vmul.f32 %v599, %v599
    %v837 = vmul.f32 %v602, %v602
    %v838 = vmul.f32 %v607, %v607
    %v839 = vmul.f32 %v610, %v610
    %v840 = vmul.f32 %v615, %v615
    %v841 = vmul.f32 %v618, %v618
    %v842 = vmul.f32 %v623, %v623
    %v843 = vmul.f32 %v626, %v626
    %v844 = vmul.f32 %v631, %v631
    %v845 = vmul.f32 %v634, %v634
    %v846 = vmul.f32 %v639, %v639
    %v847 = vmul.f32 %v642, %v642
    %v848 = vmul.f32 %v647, %v647
    %v849 = vmul.f32 %v650, %v650
    %v850 = vadd.f32 %v786, %v787
    %v851 = vadd.f32 %v850, %v788
    %v852 = vadd.f32 %v851, %v789
    %v853 = vadd.f32 %v852, %v790
    %v854 = vadd.f32 %v853, %v791
    %v855 = vadd.f32 %v854, %v792
    %v856 = vadd.f32 %v855, %v793
    %v857 = vadd.f32 %v856, %v794
    %v858 = vadd.f32 %v857, %v795
    %v859 = vadd.f32 %v858, %v796
    %v860 = vadd.f32 %v859, %v797
    %v861 = vadd.f32 %v860, %v798
    %v862 = vadd.f32 %v861, %v799
    %v863 = vadd.f32 %v862, %v800
    %v864 = vadd.f32 %v863, %v801
    %v865 = vadd.f32 %v864, %v802
    %v866 = vadd.f32 %v865, %v803
    %v867 = vadd.f32 %v866, %v804
    %v868 = vadd.f32 %v867, %v805
    %v869 = vadd.f32 %v868, %v806
    %v870 = vadd.f32 %v869, %v807
    %v871 = vadd.f32 %v870, %v808
    %v872 = vadd.f32 %v871, %v809
    %v873 = vadd.f32 %v872, %v810
    %v874 = vadd.f32 %v873, %v811
    %v875 = vadd.f32 %v874, %v812
    %v876 = vadd.f32 %v875, %v813
    %v877 = vadd.f32 %v876, %v814
    %v878 = vadd.f32 %v877, %v815
    %v879 = vadd.f32 %v878, %v816
    %v880 = vadd.f32 %v879, %v817
    %v881 = vadd.f32 %v880, %v818
    %v882 = vadd.f32 %v881, %v819
    %v883 = vadd.f32 %v882, %v820
    %v884 = vadd.f32 %v883, %v821
    %v885 = vadd.f32 %v884, %v822
    %v886 = vadd.f32 %v885, %v823
    %v887 = vadd.f32 %v886, %v824
    %v888 = vadd.f32 %v887, %v825
    %v889 = vadd.f32 %v888, %v826
    %v890 = vadd.f32 %v889, %v827
    %v891 = vadd.f32 %v890, %v828
    %v892 = vadd.f32 %v891, %v829
    %v893 = vadd.f32 %v892, %v830
    %v894 = vadd.f32 %v893, %v831
    %v895 = vadd.f32 %v894, %v832
    %v896 = vadd.f32 %v895, %v833
    %v897 = vadd.f32 %v896, %v834
    %v898 = vadd.f32 %v897, %v835
    %v899 = vadd.f32 %v898, %v836
    %v900 = vadd.f32 %v899, %v837
    %v901 = vadd.f32 %v900, %v838
    %v902 = vadd.f32 %v901, %v839
    %v903 = vadd.f32 %v902, %v840
    %v904 = vadd.f32 %v903, %v841
    %v905 = vadd.f32 %v904, %v842
    %v906 = vadd.f32 %v905, %v843
    %v907 = vadd.f32 %v906, %v844
    %v908 = vadd.f32 %v907, %v845
    %v909 = vadd.f32 %v908, %v846
    %v910 = vadd.f32 %v909, %v847
    %v911 = vadd.f32 %v910, %v848
    %v912 = vadd.f32 %v911, %v849
    %v913 = vrot.slane %v912, 4
    %v914 = vadd.f32 %v912, %v913
    %v915 = vrot.slane %v914, 2
    %v916 = vadd.f32 %v914, %v915
    %v917 = vrot.slane %v916, 1
    %v918 = vadd.f32 %v916, %v917
    %vm919 = vcmask 1040384
    %v920 = vsel %vm919, %v785, %v918
    %vm921 = vcmask 1041408
    %v922 = vsel %vm921, %v920, 0.0
    %923 = vst [vmem:[#allocation8] sm:$0xff] %v922
    // Predicated region
    $region18: #{tpu_custom_call.1} parent=1 // pred_check
      _
    $region19: #{tpu_custom_call.1} parent=1 // pred_check_branch
      %925 = sbr.rel (0) target = $region21
    $region20: #{tpu_custom_call.1} parent=1 // pred_region
      %s927 = ssub.s32 8192, 8192
      %928 = vsyncadd [#allocation4], %s927
      %s929 = sshll.u32 [#allocation7], 4
      %s930 = int_to_ptr.vmem [resolvable:$true] %s929
      %935 = dma.vmem_to_hbm [thread:$0]  %s930, 8192, %s2, [#allocation4], 128, 128, 8
    $region21: #{tpu_custom_call.1} parent=1 // pred_fallthru
      _
    // Predicated region
    $region22: #{tpu_custom_call.1} parent=1 // pred_check
      _
    $region23: #{tpu_custom_call.1} parent=1 // pred_check_branch
      %937 = sbr.rel (0) target = $region25
    $region24: #{tpu_custom_call.1} parent=1 // pred_region
      %s939 = ssub.s32 128, 128
      %940 = vsyncadd [#allocation9], %s939
      %s942 = sshll.u32 [#allocation8], 4
      %s943 = int_to_ptr.vmem [resolvable:$true] %s942
      %945 = dma.vmem_to_hbm [thread:$0]  %s943, 128, %s3, [#allocation9]
    $region25: #{tpu_custom_call.1} parent=1 // pred_fallthru
      _
    // Predicated region
    $region26: #{tpu_custom_call.1} parent=1 // pred_check
      _
    $region27: #{tpu_custom_call.1} parent=1 // pred_check_branch
      %947 = sbr.rel (0) target = $region29
    $region28: #{tpu_custom_call.1} parent=1 // pred_region
      %948 = dma.done [#allocation4], 8192
    $region29: #{tpu_custom_call.1} parent=1 // pred_fallthru
      _
    // Predicated region
    $region30: #{tpu_custom_call.1} parent=1 // pred_check
      _
    $region31: #{tpu_custom_call.1} parent=1 // pred_check_branch
      %950 = sbr.rel (0) target = $region33
    $region32: #{tpu_custom_call.1} parent=1 // pred_region
      %951 = dma.done [#allocation9], 128
    $region33: #{tpu_custom_call.1} parent=1 // pred_fallthru
      _
    %952 = vsyncpa [#allocation3], 1
    %953 = vsyncpa [#allocation6], 1
    %954 = vsyncpa [#allocation4], 1
    %955 = vsyncpa [#allocation9], 1

</llo_original>
